<compile_context>
chip_gen: v6e
topology: v6e:2x2x1
jax: 0.10.0
libtpu: 0.0.40
codegen_flags: <defaults>
</compile_context>

<pallas_src>
import functools

import jax
import jax.numpy as jnp
from jax.experimental import pallas as pl
from jax.experimental.pallas import tpu as pltpu


def _leaky_relu_kernel(x_ref, o_ref, *, negative_slope: float):
    """Elementwise leaky ReLU on one VMEM tile (slope baked in at compile time).

    max/min formulation avoids the compare+select mask vreg:
      slope <= 1 (forward):  leaky_relu(x) == max(x, slope * x)
      slope  > 1 (reverse):  leaky_relu(x) == min(x, slope * x)
    """
    x = x_ref[...]
    scaled = x * negative_slope            # python-float scalar stays in x.dtype
    if negative_slope <= 1.0:
        o_ref[...] = jnp.maximum(x, scaled)
    else:
        o_ref[...] = jnp.minimum(x, scaled)


@functools.lru_cache(maxsize=None)
def _chip_tuning():
    """Per-generation (tile_bytes_per_buffer, vmem_limit_bytes, core_parallel)."""
    kind = ""
    try:
        kind = jax.devices()[0].device_kind.lower()
    except Exception:  # pragma: no cover - no TPU visible
        pass
    if "v7" in kind or "7x" in kind:
        # 8 MiB tiles (32 MiB across in+out double buffers) need an explicit
        # scoped-VMEM bump under v7x's 64 MiB physical VMEM; shard the grid
        # across both TensorCores so DMA from both cores drives the 3.2 TB/s HBM.
        return (8 << 20, 48 << 20, True)
    if "v6" in kind:
        # 4 MiB tiles -> 16 MiB of buffers, fits the 32 MiB default scoped VMEM.
        return (4 << 20, 0, False)
    # v5e / unknown: 2 MiB tiles fit the 16 MiB default scoped VMEM; at
    # ~0.82 TB/s the per-grid-step overhead is negligible anyway.
    return (2 << 20, 0, False)


@functools.partial(jax.jit, static_argnums=(1, 2, 3, 4))
def _leaky_relu_impl(x: jax.Array, negative_slope: float, tile_bytes: int,
                     vmem_limit_bytes: int, core_parallel: bool) -> jax.Array:
    orig_shape = x.shape
    dtype = x.dtype
    n = x.size
    if n == 0:
        return x

    lanes = 128
    itemsize = jnp.dtype(dtype).itemsize
    # Sub-32-bit dtypes pack along sublanes: keep tile rows a multiple of
    # 8 * packing so interior stores stay unmasked.
    packing = max(1, 4 // itemsize)
    row_align = 8 * packing

    x_flat = jnp.reshape(x, (-1,))

    # Only pad when the flat size isn't a multiple of the 128-lane width
    # (at most 127 extra elements).  The common aligned case is a pure reshape.
    n_pad = pl.cdiv(n, lanes) * lanes
    padded = n_pad != n
    if padded:
        # TODO(synk): handle the <128-element tail with a masked in-kernel store
        # (tail count via scalar prefetch) to avoid the pad/slice HBM round trips.
        x_flat = jnp.pad(x_flat, (0, n_pad - n))

    rows = n_pad // lanes
    x2d = jnp.reshape(x_flat, (rows, lanes))

    # Constant tile BYTE size across dtypes; ragged last block handled by the
    # cdiv grid (Pallas masks it), so the array itself needs no row padding.
    target_rows = max(row_align,
                      (tile_bytes // (lanes * itemsize)) // row_align * row_align)
    if rows <= target_rows:
        tile_rows = rows          # block == full array dim: always legal
    else:
        tile_rows = target_rows   # multiple of row_align

    grid = (pl.cdiv(rows, tile_rows),)

    dims = (pltpu.CORE_PARALLEL,) if core_parallel else (pltpu.PARALLEL,)
    cp_kwargs = dict(dimension_semantics=dims)
    if vmem_limit_bytes:
        cp_kwargs["vmem_limit_bytes"] = int(vmem_limit_bytes)

    out2d = pl.pallas_call(
        functools.partial(_leaky_relu_kernel, negative_slope=negative_slope),
        out_shape=jax.ShapeDtypeStruct((rows, lanes), dtype),
        grid=grid,
        in_specs=[pl.BlockSpec((tile_rows, lanes), lambda i: (i, 0))],
        out_specs=pl.BlockSpec((tile_rows, lanes), lambda i: (i, 0)),
        compiler_params=pltpu.CompilerParams(**cp_kwargs),
    )(x2d)

    out_flat = jnp.reshape(out2d, (-1,))
    if padded:
        out_flat = out_flat[:n]
    return jnp.reshape(out_flat, orig_shape)


def _leaky_relu(x: jax.Array, slope: float) -> jax.Array:
    if not jnp.issubdtype(x.dtype, jnp.floating):
        raise TypeError(f"LeakyReLUInvertable expects a floating dtype, got {x.dtype}")
    tile_bytes, vmem_limit_bytes, core_parallel = _chip_tuning()
    return _leaky_relu_impl(x, float(slope), int(tile_bytes),
                            int(vmem_limit_bytes), bool(core_parallel))


def leaky_relu_invertable_forward(x: jax.Array, negative_slope: float = 0.01) -> jax.Array:
    """Forward pass of LeakyReLUInvertable: leaky_relu(x, negative_slope)."""
    assert negative_slope > 0.0
    return _leaky_relu(x, negative_slope)


def leaky_relu_invertable_reverse(y: jax.Array, negative_slope: float = 0.01) -> jax.Array:
    """Reverse pass: leaky_relu(y, 1 / negative_slope) — same kernel, inverted slope."""
    assert negative_slope > 0.0
    return _leaky_relu(y, 1.0 / negative_slope)


if __name__ == "__main__":
    key = jax.random.PRNGKey(0)
    x = jax.random.normal(key, (2, 4, 16, 16), dtype=jnp.float32)  # NCHW

    negative_slope = 0.01
    y = jax.block_until_ready(leaky_relu_invertable_forward(x, negative_slope))

    # Reference check against plain JAX.
    y_ref = jnp.where(x >= 0, x, x * negative_slope)
    assert y.shape == x.shape and y.dtype == x.dtype
    assert jnp.allclose(y, y_ref, atol=1e-6), "forward mismatch vs reference"

    # Round-trip sanity check (reverse(forward(x)) ~= x).
    x_rt = jax.block_until_ready(leaky_relu_invertable_reverse(y, negative_slope))
    assert jnp.allclose(x_rt, x, atol=1e-5), "reverse round-trip mismatch"

    print("KERNEL_OK")
</pallas_src>

<mosaic_0001>
module attributes {stable_mosaic.version = 11 : i64} {
  func.func @_leaky_relu_kernel(%arg0: i32, %arg1: memref<16x128xf32, #tpu.memory_space<vmem>>, %arg2: memref<16x128xf32, #tpu.memory_space<vmem>>) attributes {dimension_semantics = [#tpu.dimension_semantics<parallel>], iteration_bounds = array<i64: 1>, scalar_prefetch = 0 : i64, scratch_operands = 0 : i64, tpu.core_type = #tpu.core_type<tc>, window_params = [{transform_indices = @transform_0, window_bounds = array<i64: 16, 128>}, {transform_indices = @transform_1, window_bounds = array<i64: 16, 128>}]} {
    %c0 = arith.constant 0 : index
    %c0_0 = arith.constant 0 : index
    %0 = vector.load %arg1[%c0, %c0_0] : memref<16x128xf32, #tpu.memory_space<vmem>>, vector<16x128xf32>
    %cst = arith.constant 0.00999999977 : f32
    %1 = vector.broadcast %cst : f32 to vector<16x128xf32>
    %2 = arith.mulf %0, %1 : vector<16x128xf32>
    %3 = arith.maximumf %0, %2 : vector<16x128xf32>
    %c0_1 = arith.constant 0 : index
    %c0_2 = arith.constant 0 : index
    %4 = vector.load %arg2[%c0_1, %c0_2] : memref<16x128xf32, #tpu.memory_space<vmem>>, vector<16x128xf32>
    tpu.vector_store %arg2[%c0_1, %c0_2], %3 {strides = array<i32>} : memref<16x128xf32, #tpu.memory_space<vmem>>, vector<16x128xf32>,
    return
  }
  func.func @transform_0(%arg0: i32) -> (i32, i32) {
    %c0_i32 = arith.constant 0 : i32
    %c0_i32_0 = arith.constant 0 : i32
    return %arg0, %c0_i32 : i32, i32
  }
  func.func @transform_1(%arg0: i32) -> (i32, i32) {
    %c0_i32 = arith.constant 0 : i32
    %c0_i32_0 = arith.constant 0 : i32
    return %arg0, %c0_i32 : i32, i32
  }
}

</mosaic_0001>

<llo_original>
// kernel: _leaky_relu_impl.1
$region0: #{_leaky_relu_impl.1}
  #allocation0 [shape = 'u32[]', space=smem, size = 0x4, offset = 0x4, fixed_abs, tag = 'smem constant byte address 0x4 - core index']
  #allocation1 [shape = 'u32[144,128]{1,0:T(1,128)}', space=vmem, size = 0x12000, scoped, tag = 'internal scratch']
  %s0 = inlined_call_operand.vmem [shape: f32[16,128], index: 0, kind: input, shape index: {}]
  %s1 = inlined_call_operand.vmem [shape: f32[16,128], index: 1, kind: output, shape index: {}]
  %s2 = sld [smem:[#allocation0]]
  $region14: #{_leaky_relu_impl.1} parent=0
    _
  %s4 = ssub.s32 1, %s2
  %s5 = scalar_select 0, %s4, %s2
  // Predicated region
  $region2: #{_leaky_relu_impl.1} parent=0 // pred_check
    _
  $region3: #{_leaky_relu_impl.1} parent=0 // pred_check_branch
    %7 = sbr.rel (0) target = $region5
  $region4: #{_leaky_relu_impl.1} parent=0 // pred_region
    _
  $region5: #{_leaky_relu_impl.1} parent=0 // pred_fallthru
    _
  %v8 = vld [vmem:[%s0] sm:$0xff]
  %v9 = vld [vmem:[%s0 + $0x8] sm:$0xff]
  %v10 = vmul.f32 %v8, 0.01
  %v11 = vmul.f32 %v9, 0.01
  %v12 = vmax.f32 %v8, %v10
  %v13 = vmax.f32 %v9, %v11
  %14 = vst [vmem:[%s1] sm:$0xff] %v12
  %15 = vst [vmem:[%s1 + $0x8] sm:$0xff] %v13
  // Predicated region
  $region6: #{_leaky_relu_impl.1} parent=0 // pred_check
    _
  $region7: #{_leaky_relu_impl.1} parent=0 // pred_check_branch
    %17 = sbr.rel (0) target = $region9
  $region8: #{_leaky_relu_impl.1} parent=0 // pred_region
    _
  $region9: #{_leaky_relu_impl.1} parent=0 // pred_fallthru
    _
  // Predicated region
  $region10: #{_leaky_relu_impl.1} parent=0 // pred_check
    _
  $region11: #{_leaky_relu_impl.1} parent=0 // pred_check_branch
    %19 = sbr.rel (0) target = $region13
  $region12: #{_leaky_relu_impl.1} parent=0 // pred_region
    _
  $region13: #{_leaky_relu_impl.1} parent=0 // pred_fallthru
    _

</llo_original>
